<compile_context>
chip_gen: v7x
topology: tpu7x:2x2x1
jax: 0.10.0
libtpu: 0.0.40
codegen_flags: <defaults>
</compile_context>

<pallas_src>
import jax
import jax.numpy as jnp
from jax.experimental import pallas as pl
from jax.experimental.pallas import tpu as pltpu


# --------------------------------------------------------------------------- #
# Kernel
# --------------------------------------------------------------------------- #
def assembly_kernel(x_ref, w1_ref, b1_ref, w2_ref, b2_ref, o_ref):
    # fc1: MXU matmul with f32 accumulation, then bias + ReLU on the VPU in f32.
    h = jnp.dot(x_ref[...], w1_ref[...], preferred_element_type=jnp.float32)
    h = jnp.maximum(h + b1_ref[...], 0.0)
    # fc2: cast the activation to the weight/MXU dtype (no-op when f32).
    y = jnp.dot(h.astype(w2_ref.dtype), w2_ref[...],
                preferred_element_type=jnp.float32)
    y = y + b2_ref[...]
    # logistic lowers to the EUP slot -> no VALU divide, no inf intermediate.
    o_ref[...] = jax.nn.sigmoid(y).astype(o_ref.dtype)


# --------------------------------------------------------------------------- #
# Wrapper
# --------------------------------------------------------------------------- #
def _rup(n, m):
    return ((n + m - 1) // m) * m


def _vmem_padded_bytes(rows, cols, itemsize):
    # VMEM allocations are (8,128)-tile padded regardless of logical shape.
    return _rup(max(rows, 1), 8) * _rup(max(cols, 1), 128) * itemsize


def _vmem_capacity_bytes():
    try:
        return int(pltpu.get_tpu_info().vmem_capacity_bytes)
    except Exception:
        return 64 * 1024 * 1024  # conservative fallback (v7x per-TC VMEM)


def assembly_forward(x, w1, b1, w2, b2, *, matmul_dtype=None, batch_tile_cap=512):
    """x: (B, D_in); w1: (D_in, H); b1: (1, H); w2: (H, D_out); b2: (1, D_out)."""
    B, D_in = x.shape
    H = w1.shape[1]
    D_out = w2.shape[1]

    # bf16 MXU inputs pay off once the matmuls are non-trivial (v6e/v7x bf16-
    # native MXU); at toy sizes keep f32 so results match the f32 reference.
    if matmul_dtype is None:
        matmul_dtype = (jnp.bfloat16
                        if B * (D_in * H + H * D_out) >= (1 << 22)
                        else jnp.float32)
    mm_bytes = jnp.dtype(matmul_dtype).itemsize

    # Cast streamed / MXU operands once in the wrapper (halves their HBM->VMEM
    # DMA bytes in bf16 and avoids re-casting grid-invariant weight blocks on
    # every grid step).  Biases stay f32: they feed the f32 accumulator/epilogue.
    xm = x.astype(matmul_dtype)
    w1m = w1.astype(matmul_dtype)
    w2m = w2.astype(matmul_dtype)
    b1f = b1.astype(jnp.float32)
    b2f = b2.astype(jnp.float32)

    cap = _vmem_capacity_bytes()
    budget = int(cap * 0.6)   # headroom for Mosaic internal scratch / layout padding

    weight_bytes = (_vmem_padded_bytes(D_in, H, mm_bytes)
                    + _vmem_padded_bytes(H, D_out, mm_bytes)
                    + _vmem_padded_bytes(1, H, 4)
                    + _vmem_padded_bytes(1, D_out, 4))

    def cost(batch):
        flops = 2 * batch * (D_in * H + H * D_out)
        bytes_accessed = (batch * D_in * mm_bytes
                          + D_in * H * mm_bytes + H * D_out * mm_bytes
                          + 4 * (H + D_out)
                          + batch * D_out * 4)
        return pl.CostEstimate(flops=flops, transcendentals=batch * D_out,
                               bytes_accessed=bytes_accessed)

    # Rough resident footprint of the gridless path (inputs + h + output).
    gridless_bytes = (weight_bytes
                      + _vmem_padded_bytes(B, D_in, mm_bytes)
                      + _vmem_padded_bytes(B, H, 4)
                      + _vmem_padded_bytes(B, D_out, 4))

    if B <= batch_tile_cap and gridless_bytes <= budget:
        # ---- Small problem: single gridless invocation, whole arrays in VMEM. ----
        # No wrapper-side padding / output slicing: block == full array already
        # satisfies the (8,128) rule; Mosaic pads the vreg layout internally.
        vmem_spec = pl.BlockSpec(memory_space=pltpu.MemorySpace.VMEM)
        return pl.pallas_call(
            assembly_kernel,
            out_shape=jax.ShapeDtypeStruct((B, D_out), jnp.float32),
            in_specs=[vmem_spec] * 5,
            out_specs=vmem_spec,
            cost_estimate=cost(B),
        )(xm, w1m, b1f, w2m, b2f)

    # ---- Large batch: tile the batch, keep weights/biases resident across grid. ----
    # TODO(synk): add a K-tiled ("arbitrary") reduction axis with an f32 VMEM
    # accumulator (and an in-kernel H-chunked fori_loop for the (tile x H)
    # intermediate) for D_in/H too large for whole weight blocks to fit VMEM.
    per_row = (2 * (_rup(D_in, 128) * mm_bytes + _rup(D_out, 128) * 4)   # x/out dbl-buffered
               + _rup(H, 128) * 4)                                       # f32 intermediate h
    avail = max(budget - weight_bytes, per_row * 8)
    batch_tile = max(8, min(batch_tile_cap, (avail // per_row) // 8 * 8))
    num_tiles = max(2, pl.cdiv(B, batch_tile))        # >=2 tiles so megacore sharding is real
    batch_tile = _rup(-(-B // num_tiles), 8)
    Bp = num_tiles * batch_tile

    xp = jnp.pad(xm, ((0, Bp - B), (0, 0)))           # batch padding only; no K/N padding

    single = pl.Buffered(1)   # grid-invariant blocks: don't burn VMEM double-buffering them
    out = pl.pallas_call(
        assembly_kernel,
        out_shape=jax.ShapeDtypeStruct((Bp, D_out), jnp.float32),
        grid=(num_tiles,),
        in_specs=[
            pl.BlockSpec((batch_tile, D_in), lambda i: (i, 0)),
            pl.BlockSpec((D_in, H), lambda i: (0, 0), pipeline_mode=single),
            pl.BlockSpec((1, H), lambda i: (0, 0), pipeline_mode=single),
            pl.BlockSpec((H, D_out), lambda i: (0, 0), pipeline_mode=single),
            pl.BlockSpec((1, D_out), lambda i: (0, 0), pipeline_mode=single),
        ],
        out_specs=pl.BlockSpec((batch_tile, D_out), lambda i: (i, 0)),
        compiler_params=pltpu.CompilerParams(
            dimension_semantics=("parallel",),        # shard batch tiles across TCs (v7x)
            vmem_limit_bytes=int(cap * 0.9),
        ),
        cost_estimate=cost(Bp),
    )(xp, w1m, b1f, w2m, b2f)
    return out[:B]


# --------------------------------------------------------------------------- #
# Params (mimics nn.Linear init; stored as (in, out) so the kernel does x @ W)
# --------------------------------------------------------------------------- #
def init_params(key, input_size, hidden_size, output_size):
    k1, k2, k3, k4 = jax.random.split(key, 4)
    lim1 = 1.0 / jnp.sqrt(jnp.float32(input_size))
    lim2 = 1.0 / jnp.sqrt(jnp.float32(hidden_size))
    w1 = jax.random.uniform(k1, (input_size, hidden_size), jnp.float32, -lim1, lim1)
    b1 = jax.random.uniform(k2, (1, hidden_size), jnp.float32, -lim1, lim1)
    w2 = jax.random.uniform(k3, (hidden_size, output_size), jnp.float32, -lim2, lim2)
    b2 = jax.random.uniform(k4, (1, output_size), jnp.float32, -lim2, lim2)
    return w1, b1, w2, b2


if __name__ == "__main__":
    input_size, hidden_size, output_size = 16, 32, 8
    batch = 8

    key = jax.random.PRNGKey(0)
    kx, kp = jax.random.split(key)
    x = jax.random.normal(kx, (batch, input_size), jnp.float32)
    w1, b1, w2, b2 = init_params(kp, input_size, hidden_size, output_size)

    out = assembly_forward(x, w1, b1, w2, b2)
    out = jax.block_until_ready(out)

    # Reference check in plain JAX (same math as the PyTorch forward).
    h_ref = jnp.maximum(x @ w1 + b1, 0.0)
    y_ref = jax.nn.sigmoid(h_ref @ w2 + b2)
    assert out.shape == (batch, output_size)
    assert jnp.allclose(out, y_ref, atol=1e-5, rtol=1e-5)

    print("KERNEL_OK")
</pallas_src>

<mosaic_0001>
module attributes {stable_mosaic.version = 11 : i64} {
  func.func @assembly_kernel(%arg0: memref<8x16xf32, #tpu.memory_space<vmem>>, %arg1: memref<16x32xf32, #tpu.memory_space<vmem>>, %arg2: memref<1x32xf32, #tpu.memory_space<vmem>>, %arg3: memref<32x8xf32, #tpu.memory_space<vmem>>, %arg4: memref<1x8xf32, #tpu.memory_space<vmem>>, %arg5: memref<8x8xf32, #tpu.memory_space<vmem>>) attributes {dimension_semantics = [], scalar_prefetch = 0 : i64, scratch_operands = 0 : i64, tpu.core_type = #tpu.core_type<tc>} {
    %c0 = arith.constant 0 : index
    %c0_0 = arith.constant 0 : index
    %0 = vector.load %arg0[%c0, %c0_0] : memref<8x16xf32, #tpu.memory_space<vmem>>, vector<8x16xf32>
    %c0_1 = arith.constant 0 : index
    %c0_2 = arith.constant 0 : index
    %1 = vector.load %arg1[%c0_1, %c0_2] : memref<16x32xf32, #tpu.memory_space<vmem>>, vector<16x32xf32>
    %cst = arith.constant dense<0.000000e+00> : vector<8x32xf32>
    %2 = tpu.matmul %0, %1, %cst {dimension_numbers = #tpu.dot_dimension_numbers<[1], [0], [0], [1], [0, 0, 1, 1], [], []>} : vector<8x16xf32>, vector<16x32xf32>, vector<8x32xf32> -> vector<8x32xf32>
    %c0_3 = arith.constant 0 : index
    %c0_4 = arith.constant 0 : index
    %3 = vector.load %arg2[%c0_3, %c0_4] : memref<1x32xf32, #tpu.memory_space<vmem>>, vector<1x32xf32>
    %4 = vector.broadcast %3 : vector<1x32xf32> to vector<8x32xf32>
    %5 = arith.addf %2, %4 : vector<8x32xf32>
    %cst_5 = arith.constant 0.000000e+00 : f32
    %6 = vector.broadcast %cst_5 : f32 to vector<8x32xf32>
    %7 = arith.maximumf %5, %6 : vector<8x32xf32>
    %c0_6 = arith.constant 0 : index
    %c0_7 = arith.constant 0 : index
    %8 = vector.load %arg3[%c0_6, %c0_7] : memref<32x8xf32, #tpu.memory_space<vmem>>, vector<32x8xf32>
    %cst_8 = arith.constant dense<0.000000e+00> : vector<8x8xf32>
    %9 = tpu.matmul %7, %8, %cst_8 {dimension_numbers = #tpu.dot_dimension_numbers<[1], [0], [0], [1], [0, 0, 1, 1], [], []>} : vector<8x32xf32>, vector<32x8xf32>, vector<8x8xf32> -> vector<8x8xf32>
    %c0_9 = arith.constant 0 : index
    %c0_10 = arith.constant 0 : index
    %10 = vector.load %arg4[%c0_9, %c0_10] : memref<1x8xf32, #tpu.memory_space<vmem>>, vector<1x8xf32>
    %11 = vector.broadcast %10 : vector<1x8xf32> to vector<8x8xf32>
    %12 = arith.addf %9, %11 : vector<8x8xf32>
    %13 = arith.negf %12 : vector<8x8xf32>
    %14 = math.exp %13 : vector<8x8xf32>
    %cst_11 = arith.constant 1.000000e+00 : f32
    %15 = vector.broadcast %cst_11 : f32 to vector<8x8xf32>
    %16 = arith.addf %15, %14 : vector<8x8xf32>
    %17 = arith.divf %15, %16 : vector<8x8xf32>
    %c0_12 = arith.constant 0 : index
    %c0_13 = arith.constant 0 : index
    %18 = vector.load %arg5[%c0_12, %c0_13] : memref<8x8xf32, #tpu.memory_space<vmem>>, vector<8x8xf32>
    tpu.vector_store %arg5[%c0_12, %c0_13], %17 {strides = array<i32>} : memref<8x8xf32, #tpu.memory_space<vmem>>, vector<8x8xf32>,
    return
  }
}

</mosaic_0001>

<llo_original>
// kernel: tpu_custom_call.1
$region0: #{tpu_custom_call.1}
  #allocation0 [shape = 'u32[]', space=smem, size = 0x4, offset = 0x4, fixed_abs, tag = 'smem constant byte address 0x4 - core index']
  #allocation1 [shape = 'u32[144,128]{1,0:T(1,128)}', space=vmem, size = 0x12000, scoped, tag = 'internal scratch']
  %s0 = inlined_call_operand.vmem [shape: f32[8,16], index: 0, kind: input, shape index: {}]
  %s1 = inlined_call_operand.vmem [shape: f32[16,32], index: 1, kind: input, shape index: {}]
  %s2 = inlined_call_operand.vmem [shape: f32[1,32], index: 2, kind: input, shape index: {}]
  %s3 = inlined_call_operand.vmem [shape: f32[32,8], index: 3, kind: input, shape index: {}]
  %s4 = inlined_call_operand.vmem [shape: f32[1,8], index: 4, kind: input, shape index: {}]
  %s5 = inlined_call_operand.hbm [shape: f32[8,8], index: 5, kind: output, shape index: {}]
  %s6 = sld [smem:[#allocation0]]
  $region30: #{tpu_custom_call.1} parent=0
    _
  %s8 = ssub.s32 1, %s6
  %s9 = scalar_select 0, %s8, %s6
  $region1: #{tpu_custom_call.1} parent=0
    #allocation2 [shape = 'u8[4096]{0}', space=vmem, size = 0x1000, scoped, tag = 'output window, operand 0, single buffered']
    #allocation3 [shape = 's32[1]{0}', space=sflag, size = 0x4, scoped, tag = 'scoped memory for tpu_custom_call.1']
    %10 = vsyncpa [#allocation3], 0
    // Predicated region
    $region2: #{tpu_custom_call.1} parent=1 // pred_check
      _
    $region3: #{tpu_custom_call.1} parent=1 // pred_check_branch
      %12 = sbr.rel (0) target = $region5
    $region4: #{tpu_custom_call.1} parent=1 // pred_region
      _
    $region5: #{tpu_custom_call.1} parent=1 // pred_fallthru
      _
    // Predicated region
    $region6: #{tpu_custom_call.1} parent=1 // pred_check
      _
    $region7: #{tpu_custom_call.1} parent=1 // pred_check_branch
      %14 = sbr.rel (0) target = $region9
    $region8: #{tpu_custom_call.1} parent=1 // pred_region
      _
    $region9: #{tpu_custom_call.1} parent=1 // pred_fallthru
      _
    // Predicated region
    $region10: #{tpu_custom_call.1} parent=1 // pred_check
      _
    $region11: #{tpu_custom_call.1} parent=1 // pred_check_branch
      %16 = sbr.rel (0) target = $region13
    $region12: #{tpu_custom_call.1} parent=1 // pred_region
      _
    $region13: #{tpu_custom_call.1} parent=1 // pred_fallthru
      _
    // Predicated region
    $region14: #{tpu_custom_call.1} parent=1 // pred_check
      _
    $region15: #{tpu_custom_call.1} parent=1 // pred_check_branch
      %18 = sbr.rel (0) target = $region17
    $region16: #{tpu_custom_call.1} parent=1 // pred_region
      _
    $region17: #{tpu_custom_call.1} parent=1 // pred_fallthru
      _
    // Predicated region
    $region18: #{tpu_custom_call.1} parent=1 // pred_check
      _
    $region19: #{tpu_custom_call.1} parent=1 // pred_check_branch
      %20 = sbr.rel (0) target = $region21
    $region20: #{tpu_custom_call.1} parent=1 // pred_region
      _
    $region21: #{tpu_custom_call.1} parent=1 // pred_fallthru
      _
    %v21 = vld [vmem:[%s0] sm:$0xff]
    %v22 = vld [vmem:[%s1] sm:$0xff]
    %v23 = vld [vmem:[%s1 + $0x8] sm:$0xff]
    %v24 = vld [vmem:[%s2] sm:$0x1]
    %v26 = vlaneseq
    %v27 = vshrl.u32 %v26, 7
    %v28 = vsub.s32 0, %v27
    %v29 = vrot.slane %v24, %v28
    %vm31 = vcmask 130048
    %v33 = vsel %vm31, %v21, 0
    %35 = vmatprep.subr.mxu0 0.0
    %36 = vmatpush1.msra.mxu0 %v22
    %37 = vmatprep.subr.mxu0 0.0
    %38 = vmatpush1.msra.mxu0 %v23
    %39 = vmatprep.subr.mxu0 0.0
    %40 = vmatpush1.msra.mxu0 0.0
    %41 = vmatprep.subr.mxu0 0.0
    %42 = vmatpush1.msra.mxu0 0.0
    %43 = vmatprep.subr.mxu0 0.0
    %44 = vmatpush1.msra.mxu0 0.0
    %45 = vmatprep.subr.mxu0 0.0
    %46 = vmatpush1.msra.mxu0 0.0
    %47 = vmatprep.subr.mxu0 0.0
    %48 = vmatpush1.msra.mxu0 0.0
    %49 = vmatprep.subr.mxu0 0.0
    %50 = vmatpush1.msra.mxu0 0.0
    %51 = vmatprep.subr.mxu0 0.0
    %52 = vmatpush1.msra.mxu0 0.0
    %53 = vmatprep.subr.mxu0 0.0
    %54 = vmatpush1.msra.mxu0 0.0
    %55 = vmatprep.subr.mxu0 0.0
    %56 = vmatpush1.msra.mxu0 0.0
    %57 = vmatprep.subr.mxu0 0.0
    %58 = vmatpush1.msra.mxu0 0.0
    %59 = vmatprep.subr.mxu0 0.0
    %60 = vmatpush1.msra.mxu0 0.0
    %61 = vmatprep.subr.mxu0 0.0
    %62 = vmatpush1.msra.mxu0 0.0
    %63 = vmatprep.subr.mxu0 0.0
    %64 = vmatpush1.msra.mxu0 0.0
    %65 = vmatprep.subr.mxu0 0.0
    %66 = vmatpush1.msra.mxu0 0.0
    %67 = vmatprep.subr.mxu0 0.0
    %68 = vmatpush1.msra.mxu0 0.0
    %69 = vmatprep.subr.mxu0 0.0
    %70 = vmatpush1.msra.mxu0 0.0
    %71 = vmatprep.subr.mxu0 0.0
    %72 = vmatpush1.msra.mxu0 0.0
    %73 = vmatprep.subr.mxu0 0.0
    %74 = vmatpush1.msra.mxu0 0.0
    %75 = vmatprep.subr.mxu0 0.0
    %76 = vmatpush1.msra.mxu0 0.0
    %77 = vmatprep.subr.mxu0 0.0
    %78 = vmatpush1.msra.mxu0 0.0
    %79 = vmatprep.subr.mxu0 0.0
    %80 = vmatpush1.msra.mxu0 0.0
    %81 = vmatprep.subr.mxu0 0.0
    %82 = vmatpush1.msra.mxu0 0.0
    %83 = vmatprep.subr.mxu0 0.0
    %84 = vmatpush1.msra.mxu0 0.0
    %85 = vmatprep.subr.mxu0 0.0
    %86 = vmatpush1.msra.mxu0 0.0
    %87 = vmatprep.subr.mxu0 0.0
    %88 = vmatpush1.msra.mxu0 0.0
    %89 = vmatprep.subr.mxu0 0.0
    %90 = vmatpush1.msra.mxu0 0.0
    %91 = vmatprep.subr.mxu0 0.0
    %92 = vmatpush1.msra.mxu0 0.0
    %93 = vmatprep.subr.mxu0 0.0
    %94 = vmatpush1.msra.mxu0 0.0
    %95 = vmatprep.subr.mxu0 0.0
    %96 = vmatpush1.msra.mxu0 0.0
    %97 = vmatprep.subr.mxu0 0.0
    %98 = vmatpush1.msra.mxu0 0.0
    %99 = vmatprep.mubr.f32.mxu0 0.0
    %100 = vmatmul.mubr.f32.gmra.mrb[0].mxu0 %v33
    %v101 = vpop.f32.mrb[0].mxu0
    %v102 = vadd.f32 %v29, %v101
    %v103 = vpop.f32.mrb[0].mxu0
    %104 = vdwg.mxu0
    %v105 = vmax.f32 %v102, 0.0
    %v106 = vld [vmem:[%s3] sm:$0xff]
    %v107 = vld [vmem:[%s3 + $0x8] sm:$0xff]
    %v108 = vld [vmem:[%s3 + $0x10] sm:$0xff]
    %v109 = vld [vmem:[%s3 + $0x18] sm:$0xff]
    %v110 = vld [vmem:[%s4] sm:$0x1]
    %v112 = vlaneseq
    %v113 = vshrl.u32 %v112, 7
    %v114 = vsub.s32 0, %v113
    %v115 = vrot.slane %v110, %v114
    %vm117 = vcmask 261120
    %v119 = vsel %vm117, %v105, 0
    %121 = vmatprep.subr.mxu0 0.0
    %122 = vmatpush1.msra.mxu0 %v106
    %123 = vmatprep.subr.mxu0 0.0
    %124 = vmatpush1.msra.mxu0 %v107
    %125 = vmatprep.subr.mxu0 0.0
    %126 = vmatpush1.msra.mxu0 %v108
    %127 = vmatprep.subr.mxu0 0.0
    %128 = vmatpush1.msra.mxu0 %v109
    %129 = vmatprep.subr.mxu0 0.0
    %130 = vmatpush1.msra.mxu0 0.0
    %131 = vmatprep.subr.mxu0 0.0
    %132 = vmatpush1.msra.mxu0 0.0
    %133 = vmatprep.subr.mxu0 0.0
    %134 = vmatpush1.msra.mxu0 0.0
    %135 = vmatprep.subr.mxu0 0.0
    %136 = vmatpush1.msra.mxu0 0.0
    %137 = vmatprep.subr.mxu0 0.0
    %138 = vmatpush1.msra.mxu0 0.0
    %139 = vmatprep.subr.mxu0 0.0
    %140 = vmatpush1.msra.mxu0 0.0
    %141 = vmatprep.subr.mxu0 0.0
    %142 = vmatpush1.msra.mxu0 0.0
    %143 = vmatprep.subr.mxu0 0.0
    %144 = vmatpush1.msra.mxu0 0.0
    %145 = vmatprep.subr.mxu0 0.0
    %146 = vmatpush1.msra.mxu0 0.0
    %147 = vmatprep.subr.mxu0 0.0
    %148 = vmatpush1.msra.mxu0 0.0
    %149 = vmatprep.subr.mxu0 0.0
    %150 = vmatpush1.msra.mxu0 0.0
    %151 = vmatprep.subr.mxu0 0.0
    %152 = vmatpush1.msra.mxu0 0.0
    %153 = vmatprep.subr.mxu0 0.0
    %154 = vmatpush1.msra.mxu0 0.0
    %155 = vmatprep.subr.mxu0 0.0
    %156 = vmatpush1.msra.mxu0 0.0
    %157 = vmatprep.subr.mxu0 0.0
    %158 = vmatpush1.msra.mxu0 0.0
    %159 = vmatprep.subr.mxu0 0.0
    %160 = vmatpush1.msra.mxu0 0.0
    %161 = vmatprep.subr.mxu0 0.0
    %162 = vmatpush1.msra.mxu0 0.0
    %163 = vmatprep.subr.mxu0 0.0
    %164 = vmatpush1.msra.mxu0 0.0
    %165 = vmatprep.subr.mxu0 0.0
    %166 = vmatpush1.msra.mxu0 0.0
    %167 = vmatprep.subr.mxu0 0.0
    %168 = vmatpush1.msra.mxu0 0.0
    %169 = vmatprep.subr.mxu0 0.0
    %170 = vmatpush1.msra.mxu0 0.0
    %171 = vmatprep.subr.mxu0 0.0
    %172 = vmatpush1.msra.mxu0 0.0
    %173 = vmatprep.subr.mxu0 0.0
    %174 = vmatpush1.msra.mxu0 0.0
    %175 = vmatprep.subr.mxu0 0.0
    %176 = vmatpush1.msra.mxu0 0.0
    %177 = vmatprep.subr.mxu0 0.0
    %178 = vmatpush1.msra.mxu0 0.0
    %179 = vmatprep.subr.mxu0 0.0
    %180 = vmatpush1.msra.mxu0 0.0
    %181 = vmatprep.subr.mxu0 0.0
    %182 = vmatpush1.msra.mxu0 0.0
    %183 = vmatprep.subr.mxu0 0.0
    %184 = vmatpush1.msra.mxu0 0.0
    %185 = vmatprep.mubr.f32.mxu0 0.0
    %186 = vmatmul.mubr.f32.gmra.mrb[0].mxu0 %v119
    %v187 = vpop.f32.mrb[0].mxu0
    %v188 = vadd.f32 %v115, %v187
    %v189 = vpop.f32.mrb[0].mxu0
    %190 = vdwg.mxu0
    %v191 = vxor.u32 %v188, 2147483648
    %v192 = vmul.f32 %v191, 1.442695
    %v193 = vpow.pop %v192
    %v194 = vadd.f32 %v193, 1.0
    %v195 = vrcp.pop %v194
    %v196 = vmul.f32 1.0, %v195
    %vm197 = vcmask 64512
    %198 = vst.msk [vmem:[#allocation2] sm:$0xff] %vm197, %v196
    // Predicated region
    $region22: #{tpu_custom_call.1} parent=1 // pred_check
      _
    $region23: #{tpu_custom_call.1} parent=1 // pred_check_branch
      %200 = sbr.rel (0) target = $region25
    $region24: #{tpu_custom_call.1} parent=1 // pred_region
      %s202 = ssub.s32 128, 128
      %203 = vsyncadd [#allocation3], %s202
      %s205 = sshll.u32 [#allocation2], 4
      %s206 = int_to_ptr.vmem [resolvable:$true] %s205
      %208 = dma.vmem_to_hbm [thread:$0]  %s206, 128, %s5, [#allocation3]
    $region25: #{tpu_custom_call.1} parent=1 // pred_fallthru
      _
    // Predicated region
    $region26: #{tpu_custom_call.1} parent=1 // pred_check
      _
    $region27: #{tpu_custom_call.1} parent=1 // pred_check_branch
      %210 = sbr.rel (0) target = $region29
    $region28: #{tpu_custom_call.1} parent=1 // pred_region
      %211 = dma.done [#allocation3], 128
    $region29: #{tpu_custom_call.1} parent=1 // pred_fallthru
      _
    %212 = vsyncpa [#allocation3], 1

</llo_original>
